<compile_context>
chip_gen: v5e
topology: v5e:2x2
jax: 0.10.0
libtpu: 0.0.40
codegen_flags: <defaults>
</compile_context>

<pallas_src>
import functools

import jax
import jax.numpy as jnp
from jax import lax
from jax.experimental import pallas as pl
from jax.experimental.pallas import tpu as pltpu

LANES = 128
ROW_ALIGN = 16        # satisfies min sublane tiling for f32 (8) and bf16 (16)


def _device_kind():
    try:
        return jax.devices()[0].device_kind.lower()
    except Exception:
        return ""


_IS_V7 = "v7" in _device_kind()
MAX_ROW_TILE = 2048 if _IS_V7 else 1024          # ~3 MiB pipelined VMEM on v7x
_GRID_SEMANTICS = getattr(pltpu, "CORE_PARALLEL", "parallel") if _IS_V7 else "parallel"


def _cdiv(a, b):
    return -(-a // b)


def _round_up(a, b):
    return _cdiv(a, b) * b


def _pow_static(v, gamma):
    """Static-exponent power: avoid EUP exp/log for the common cases."""
    if gamma == 2.0:
        return v * v
    if gamma == 1.0:
        return v
    if gamma == 0.0:
        return jnp.ones_like(v)
    return jnp.power(v, gamma)


def _loss_elems(x, t, gamma, alpha, epsilon):
    """Element-wise focal loss (used by both the kernel and the jnp tail)."""
    x = x.astype(jnp.float32)
    t = t.astype(jnp.float32)
    one_minus_x = 1.0 - x
    pos = (-alpha) * t * _pow_static(one_minus_x, gamma) * jnp.log(x + epsilon)
    neg = (-(1.0 - alpha)) * (1.0 - t) * _pow_static(x, gamma) \
        * jnp.log(one_minus_x + epsilon)
    return pos + neg


def _fold_to_vreg(x):
    """Balanced-tree fold of an (r, 128) f32 tile (r % 8 == 0) down to (8, 128).

    Pairwise tree over sublane-aligned 8-row chunks: log2-depth dependency
    chain (hidden under DMA/EUP) instead of a linear running sum.
    """
    chunks = [x[k * 8:(k + 1) * 8, :] for k in range(x.shape[0] // 8)]
    while len(chunks) > 1:
        nxt = [chunks[a] + chunks[a + 1] for a in range(0, len(chunks) - 1, 2)]
        if len(chunks) % 2:
            nxt.append(chunks[-1])
        chunks = nxt
    return chunks[0]


def _focal_kernel(x_ref, t_ref, out_ref, *, gamma, alpha, epsilon,
                  ragged, valid_rows_last):
    # Hot path: pure streaming element-wise math (VPU + 2 EUP logs / element).
    loss = _loss_elems(x_ref[...], t_ref[...], gamma, alpha, epsilon)

    if ragged:
        # Only the very last row block has garbage rows from the ragged edge
        # (possible NaN from log of garbage; the select discards them).  The
        # mask work (iota + compare + select) is gated behind pl.when so it
        # only runs on that one step, not in the hot loop.
        is_last = pl.program_id(0) == pl.num_programs(0) - 1

        @pl.when(is_last)
        def _():
            row = lax.broadcasted_iota(jnp.int32, loss.shape, 0)
            masked = jnp.where(row < valid_rows_last, loss, 0.0)
            out_ref[...] = _fold_to_vreg(masked)

        @pl.when(jnp.logical_not(is_last))
        def _():
            out_ref[...] = _fold_to_vreg(loss)
    else:
        out_ref[...] = _fold_to_vreg(loss)


def _pick_row_tile(n_rows, max_tile):
    """Largest reasonable multiple of ROW_ALIGN that keeps ragged slack small."""
    cap = min(max_tile, (n_rows // ROW_ALIGN) * ROW_ALIGN)
    n_blocks = _cdiv(n_rows, cap)
    tile = _round_up(_cdiv(n_rows, n_blocks), ROW_ALIGN)
    return min(tile, cap)


def focal_loss(probs, target, gamma=2.0, alpha=0.25, epsilon=1e-9):
    assert probs.shape == target.shape
    n_elem = probs.size
    gamma, alpha, epsilon = float(gamma), float(alpha), float(epsilon)

    flat_x = jnp.ravel(probs).astype(jnp.float32)
    # Multi-hot (0/1) key: bf16 is exact for 0/1 and halves its HBM traffic.
    flat_t = jnp.ravel(target)
    if flat_t.dtype != jnp.bfloat16:
        flat_t = flat_t.astype(jnp.bfloat16)

    n_rows = n_elem // LANES
    tail = n_elem - n_rows * LANES

    if n_rows < ROW_ALIGN:
        # Tiny input: a kernel launch is not worth it.
        return jnp.sum(_loss_elems(flat_x, flat_t, gamma, alpha, epsilon)) \
            / jnp.float32(n_elem)

    aligned = n_rows * LANES
    if tail:
        # <128-element tail handled with plain jnp (tiny).  The aligned-prefix
        # slice below is the only extra copy on the unaligned path (no more
        # full jnp.pad of both inputs).
        tail_sum = jnp.sum(_loss_elems(flat_x[aligned:], flat_t[aligned:],
                                       gamma, alpha, epsilon))
        x_main, t_main = flat_x[:aligned], flat_t[:aligned]
    else:
        tail_sum = jnp.float32(0.0)
        x_main, t_main = flat_x, flat_t          # pure bitcast, zero copies

    x2d = x_main.reshape(n_rows, LANES)
    t2d = t_main.reshape(n_rows, LANES)

    row_tile = _pick_row_tile(n_rows, MAX_ROW_TILE)
    n_blocks = _cdiv(n_rows, row_tile)
    ragged = (n_rows % row_tile) != 0
    valid_rows_last = n_rows - (n_blocks - 1) * row_tile

    kernel = functools.partial(
        _focal_kernel,
        gamma=gamma, alpha=alpha, epsilon=epsilon,
        ragged=ragged, valid_rows_last=valid_rows_last,
    )

    partials = pl.pallas_call(
        kernel,
        out_shape=jax.ShapeDtypeStruct((n_blocks * 8, LANES), jnp.float32),
        grid=(n_blocks,),
        in_specs=[
            pl.BlockSpec((row_tile, LANES), lambda i: (i, 0)),
            pl.BlockSpec((row_tile, LANES), lambda i: (i, 0)),
        ],
        out_specs=pl.BlockSpec((8, LANES), lambda i: (i, 0)),
        compiler_params=pltpu.CompilerParams(
            dimension_semantics=(_GRID_SEMANTICS,),
        ),
    )(x2d, t2d)

    # Tiny final reduce + mean over the ORIGINAL element count.
    return (jnp.sum(partials) + tail_sum) / jnp.float32(n_elem)


def focal_loss_ref(probs, target, gamma=2.0, alpha=0.25, epsilon=1e-9):
    x = probs.astype(jnp.float32)
    t = target.astype(jnp.float32)
    loss = -alpha * t * jnp.power(1.0 - x, gamma) * jnp.log(x + epsilon)
    loss = loss + (-(1.0 - alpha) * (1.0 - t) * jnp.power(x, gamma)
                   * jnp.log(1.0 - x + epsilon))
    return jnp.mean(loss)


if __name__ == "__main__":
    key = jax.random.PRNGKey(0)
    k1, k2, k3, k4 = jax.random.split(key, 4)

    # Case 1: lane-aligned NCHW input (2*4*16*16 = 2048 elems = 16 rows of 128).
    B, C, H, W = 2, 4, 16, 16
    probs = jax.random.uniform(k1, (B, C, H, W), jnp.float32,
                               minval=0.01, maxval=0.99)
    target = (jax.random.uniform(k2, (B, C, H, W)) > 0.7).astype(jnp.float32)
    out = jax.block_until_ready(focal_loss(probs, target))
    ref = focal_loss_ref(probs, target)
    assert jnp.allclose(out, ref, rtol=1e-5, atol=1e-6), (out, ref)

    # Case 2: unaligned size — exercises the ragged last row block (pl.when
    # mask, garbage-lane NaNs discarded by the select) and the <128-elem tail.
    shape2 = (2, 3, 23, 29)   # 4002 elements -> 31 full rows + 34-elem tail
    probs2 = jax.random.uniform(k3, shape2, jnp.float32,
                                minval=0.01, maxval=0.99)
    target2 = (jax.random.uniform(k4, shape2) > 0.6).astype(jnp.float32)
    out2 = jax.block_until_ready(focal_loss(probs2, target2))
    ref2 = focal_loss_ref(probs2, target2)
    assert jnp.allclose(out2, ref2, rtol=1e-5, atol=1e-6), (out2, ref2)

    print("KERNEL_OK")
</pallas_src>

<mosaic_0001>
module attributes {stable_mosaic.version = 11 : i64} {
  func.func @_focal_kernel(%arg0: i32, %arg1: memref<16x128xf32, #tpu.memory_space<vmem>>, %arg2: memref<16x128xbf16, #tpu.memory_space<vmem>>, %arg3: memref<8x128xf32, #tpu.memory_space<vmem>>) attributes {dimension_semantics = [#tpu.dimension_semantics<parallel>], iteration_bounds = array<i64: 1>, scalar_prefetch = 0 : i64, scratch_operands = 0 : i64, tpu.core_type = #tpu.core_type<tc>, window_params = [{transform_indices = @transform_0, window_bounds = array<i64: 16, 128>}, {transform_indices = @transform_1, window_bounds = array<i64: 16, 128>}, {transform_indices = @transform_2, window_bounds = array<i64: 8, 128>}]} {
    %c0 = arith.constant 0 : index
    %c0_0 = arith.constant 0 : index
    %0 = vector.load %arg1[%c0, %c0_0] : memref<16x128xf32, #tpu.memory_space<vmem>>, vector<16x128xf32>
    %c0_1 = arith.constant 0 : index
    %c0_2 = arith.constant 0 : index
    %1 = vector.load %arg2[%c0_1, %c0_2] : memref<16x128xbf16, #tpu.memory_space<vmem>>, vector<16x128xbf16>
    %2 = arith.extf %1 : vector<16x128xbf16> to vector<16x128xf32>
    %cst = arith.constant 1.000000e+00 : f32
    %3 = vector.broadcast %cst : f32 to vector<16x128xf32>
    %4 = arith.subf %3, %0 : vector<16x128xf32>
    %cst_3 = arith.constant -2.500000e-01 : f32
    %5 = vector.broadcast %cst_3 : f32 to vector<16x128xf32>
    %6 = arith.mulf %5, %2 : vector<16x128xf32>
    %7 = arith.mulf %4, %4 : vector<16x128xf32>
    %8 = arith.mulf %6, %7 : vector<16x128xf32>
    %cst_4 = arith.constant 9.99999971E-10 : f32
    %9 = vector.broadcast %cst_4 : f32 to vector<16x128xf32>
    %10 = arith.addf %0, %9 : vector<16x128xf32>
    %11 = math.log %10 : vector<16x128xf32>
    %12 = arith.mulf %8, %11 : vector<16x128xf32>
    %cst_5 = arith.constant 1.000000e+00 : f32
    %13 = vector.broadcast %cst_5 : f32 to vector<16x128xf32>
    %14 = arith.subf %13, %2 : vector<16x128xf32>
    %cst_6 = arith.constant -7.500000e-01 : f32
    %15 = vector.broadcast %cst_6 : f32 to vector<16x128xf32>
    %16 = arith.mulf %15, %14 : vector<16x128xf32>
    %17 = arith.mulf %0, %0 : vector<16x128xf32>
    %18 = arith.mulf %16, %17 : vector<16x128xf32>
    %cst_7 = arith.constant 9.99999971E-10 : f32
    %19 = vector.broadcast %cst_7 : f32 to vector<16x128xf32>
    %20 = arith.addf %4, %19 : vector<16x128xf32>
    %21 = math.log %20 : vector<16x128xf32>
    %22 = arith.mulf %18, %21 : vector<16x128xf32>
    %23 = arith.addf %12, %22 : vector<16x128xf32>
    %24 = vector.extract_strided_slice %23 {offsets = [0, 0], sizes = [8, 128], strides = [1, 1]} : vector<16x128xf32> to vector<8x128xf32>
    %25 = vector.extract_strided_slice %23 {offsets = [8, 0], sizes = [8, 128], strides = [1, 1]} : vector<16x128xf32> to vector<8x128xf32>
    %26 = arith.addf %24, %25 : vector<8x128xf32>
    %c0_8 = arith.constant 0 : index
    %c0_9 = arith.constant 0 : index
    %27 = vector.load %arg3[%c0_8, %c0_9] : memref<8x128xf32, #tpu.memory_space<vmem>>, vector<8x128xf32>
    tpu.vector_store %arg3[%c0_8, %c0_9], %26 {strides = array<i32>} : memref<8x128xf32, #tpu.memory_space<vmem>>, vector<8x128xf32>,
    return
  }
  func.func @transform_0(%arg0: i32) -> (i32, i32) {
    %c0_i32 = arith.constant 0 : i32
    %c0_i32_0 = arith.constant 0 : i32
    return %arg0, %c0_i32 : i32, i32
  }
  func.func @transform_1(%arg0: i32) -> (i32, i32) {
    %c0_i32 = arith.constant 0 : i32
    %c0_i32_0 = arith.constant 0 : i32
    return %arg0, %c0_i32 : i32, i32
  }
  func.func @transform_2(%arg0: i32) -> (i32, i32) {
    %c0_i32 = arith.constant 0 : i32
    %c0_i32_0 = arith.constant 0 : i32
    return %arg0, %c0_i32 : i32, i32
  }
}

</mosaic_0001>

<llo_original>
// kernel: tpu_custom_call.1
$region0: #{tpu_custom_call.1}
  #allocation0 [shape = 'u32[]', space=smem, size = 0x4, offset = 0x4, fixed_abs, tag = 'smem constant byte address 0x4 - core index']
  #allocation1 [shape = 'u32[72,128]{1,0:T(1,128)}', space=vmem, size = 0x9000, scoped, tag = 'internal scratch']
  %s0 = inlined_call_operand.hbm [shape: f32[16,128], index: 0, kind: input, shape index: {}]
  %s1 = inlined_call_operand.hbm [shape: bf16[16,128], index: 1, kind: input, shape index: {}]
  %s2 = inlined_call_operand.hbm [shape: f32[8,128], index: 2, kind: output, shape index: {}]
  %s3 = sld [smem:[#allocation0]]
  $region26: #{tpu_custom_call.1} parent=0
    _
  %s5 = ssub.s32 1, %s3
  %s6 = scalar_select 0, %s5, %s3
  $region1: #{tpu_custom_call.1} parent=0
    #allocation2 [shape = 'u8[8192]{0}', space=vmem, size = 0x2000, scoped, tag = 'input window, operand 0, single buffered']
    #allocation3 [shape = 's32[1]{0}', space=sflag, size = 0x4, scoped, tag = 'scoped memory for tpu_custom_call.1']
    #allocation4 [shape = 's32[1]{0}', space=sflag, size = 0x4, scoped, tag = 'scoped memory for tpu_custom_call.1']
    #allocation5 [shape = 'u8[4096]{0}', space=vmem, size = 0x1000, scoped, tag = 'input window, operand 1, single buffered']
    #allocation6 [shape = 's32[1]{0}', space=sflag, size = 0x4, scoped, tag = 'scoped memory for tpu_custom_call.1']
    #allocation7 [shape = 'u8[4096]{0}', space=vmem, size = 0x1000, scoped, tag = 'output window, operand 0, single buffered']
    %7 = vsyncpa [#allocation3], 0
    %8 = vsyncpa [#allocation6], 0
    %9 = vsyncpa [#allocation4], 0
    // Predicated region
    $region2: #{tpu_custom_call.1} parent=1 // pred_check
      _
    $region3: #{tpu_custom_call.1} parent=1 // pred_check_branch
      %11 = sbr.rel (0) target = $region5
    $region4: #{tpu_custom_call.1} parent=1 // pred_region
      %13 = vsyncadd [#allocation3], 0
      %s14 = sshll.u32 %s0, 4
      %s15 = int_to_ptr.hbm [resolvable:$true] %s14
      %s16 = sshll.u32 [#allocation2], 4
      %s17 = int_to_ptr.vmem [resolvable:$true] %s16
      %22 = dma.hbm_to_vmem [thread:$0]  %s15, 256, %s17, [#allocation3], 128, 128, 8
    $region5: #{tpu_custom_call.1} parent=1 // pred_fallthru
      _
    // Predicated region
    $region6: #{tpu_custom_call.1} parent=1 // pred_check
      _
    $region7: #{tpu_custom_call.1} parent=1 // pred_check_branch
      %24 = sbr.rel (0) target = $region9
    $region8: #{tpu_custom_call.1} parent=1 // pred_region
      %26 = vsyncadd [#allocation6], 0
      %s27 = sshll.u32 %s1, 4
      %s28 = int_to_ptr.hbm [resolvable:$true] %s27
      %s29 = sshll.u32 [#allocation5], 4
      %s30 = int_to_ptr.vmem [resolvable:$true] %s29
      %35 = dma.hbm_to_vmem [thread:$0]  %s28, 128, %s30, [#allocation6], 64, 64, 4
    $region9: #{tpu_custom_call.1} parent=1 // pred_fallthru
      _
    // Predicated region
    $region10: #{tpu_custom_call.1} parent=1 // pred_check
      _
    $region11: #{tpu_custom_call.1} parent=1 // pred_check_branch
      %37 = sbr.rel (0) target = $region13
    $region12: #{tpu_custom_call.1} parent=1 // pred_region
      %39 = dma.done [#allocation3], 256
    $region13: #{tpu_custom_call.1} parent=1 // pred_fallthru
      _
    // Predicated region
    $region14: #{tpu_custom_call.1} parent=1 // pred_check
      _
    $region15: #{tpu_custom_call.1} parent=1 // pred_check_branch
      %41 = sbr.rel (0) target = $region17
    $region16: #{tpu_custom_call.1} parent=1 // pred_region
      %43 = dma.done [#allocation6], 128
    $region17: #{tpu_custom_call.1} parent=1 // pred_fallthru
      _
    %v44 = vld [vmem:[#allocation2] sm:$0xff]
    %v45 = vld [vmem:[#allocation2 + $0x8] sm:$0xff]
    %v46 = vld [vmem:[#allocation5] sm:$0xf]
    %v47 = vld [vmem:[#allocation5 + $0x4] sm:$0xf]
    %v48 = vunpack.c.l.bf16 %v46
    %v49 = vunpack.c.l.bf16 %v47
    %v50 = vsub.f32 1.0, %v44
    %v51 = vsub.f32 1.0, %v45
    %v52 = vmul.f32 %v48, -0.25
    %v53 = vmul.f32 %v49, -0.25
    %v54 = vmul.f32 %v50, %v50
    %v55 = vmul.f32 %v51, %v51
    %v56 = vmul.f32 %v52, %v54
    %v57 = vmul.f32 %v53, %v55
    %v58 = vadd.f32 %v44, 1e-09
    %v59 = vadd.f32 %v45, 1e-09
    %v60 = vlog2.pop %v58
    %v61 = vmul.f32 %v60, 0.6931472
    %v62 = vlog2.pop %v59
    %v63 = vmul.f32 %v62, 0.6931472
    %v64 = vmul.f32 %v56, %v61
    %v65 = vmul.f32 %v57, %v63
    %v66 = vsub.f32 1.0, %v48
    %v67 = vsub.f32 1.0, %v49
    %v68 = vmul.f32 %v66, -0.75
    %v69 = vmul.f32 %v67, -0.75
    %v70 = vmul.f32 %v44, %v44
    %v71 = vmul.f32 %v45, %v45
    %v72 = vmul.f32 %v68, %v70
    %v73 = vmul.f32 %v69, %v71
    %v74 = vadd.f32 %v50, 1e-09
    %v75 = vadd.f32 %v51, 1e-09
    %v76 = vlog2.pop %v74
    %v77 = vmul.f32 %v76, 0.6931472
    %v78 = vlog2.pop %v75
    %v79 = vmul.f32 %v78, 0.6931472
    %v80 = vmul.f32 %v72, %v77
    %v81 = vmul.f32 %v73, %v79
    %v82 = vadd.f32 %v64, %v80
    %v83 = vadd.f32 %v65, %v81
    %v84 = vadd.f32 %v82, %v83
    %85 = vst [vmem:[#allocation7] sm:$0xff] %v84
    // Predicated region
    $region18: #{tpu_custom_call.1} parent=1 // pred_check
      _
    $region19: #{tpu_custom_call.1} parent=1 // pred_check_branch
      %87 = sbr.rel (0) target = $region21
    $region20: #{tpu_custom_call.1} parent=1 // pred_region
      %89 = vsyncadd [#allocation4], 0
      %s91 = sshll.u32 [#allocation7], 4
      %s92 = int_to_ptr.vmem [resolvable:$true] %s91
      %s93 = sshll.u32 %s2, 4
      %s94 = int_to_ptr.hbm [resolvable:$true] %s93
      %96 = dma.vmem_to_hbm [thread:$0]  %s92, 128, %s94, [#allocation4]
    $region21: #{tpu_custom_call.1} parent=1 // pred_fallthru
      _
    // Predicated region
    $region22: #{tpu_custom_call.1} parent=1 // pred_check
      _
    $region23: #{tpu_custom_call.1} parent=1 // pred_check_branch
      %98 = sbr.rel (0) target = $region25
    $region24: #{tpu_custom_call.1} parent=1 // pred_region
      %100 = dma.done [#allocation4], 128
    $region25: #{tpu_custom_call.1} parent=1 // pred_fallthru
      _
    %101 = vsyncpa [#allocation3], 1
    %102 = vsyncpa [#allocation6], 1
    %103 = vsyncpa [#allocation4], 1

</llo_original>
